<compile_context>
chip_gen: v6e
topology: v6e:2x2x1
jax: 0.10.0
libtpu: 0.0.40
codegen_flags: <defaults>
</compile_context>

<pallas_src>
import jax
import jax.numpy as jnp
from jax import lax
from jax.experimental import pallas as pl
from jax.experimental.pallas import tpu as pltpu


def _cosine_kernel(p_ref, t_ref, cos_ref):
    p = p_ref[...]                                   # (TB, D) f32
    t = t_ref[...]                                   # (TB, D) f32

    dot = jnp.sum(p * t, axis=-1, keepdims=True)     # (TB, 1)
    pp = jnp.sum(p * p, axis=-1, keepdims=True)      # |p|^2
    tt = jnp.sum(t * t, axis=-1, keepdims=True)      # |t|^2

    # Match the reference CUDA kernel: cos = dot / (|p| * |t|), 0 if either
    # norm is exactly zero.  rsqrt runs on the EUP slot (free here) instead of
    # a VPU sqrt+divide sequence.
    # TODO(synk): PyTorch's F.cosine_similarity clamps norms with eps=1e-8;
    # the spec's CUDA kernel (and this port) uses the exact-zero check instead.
    valid = (pp > 0.0) & (tt > 0.0)
    pp_safe = jnp.where(valid, pp, 1.0)
    tt_safe = jnp.where(valid, tt, 1.0)
    cos = dot * lax.rsqrt(pp_safe) * lax.rsqrt(tt_safe)
    cos_ref[...] = jnp.where(valid, cos, 0.0)


def _choose_tile_b(batch: int, feat: int) -> int:
    """Largest row tile such that 2 inputs x 2 pipeline buffers fit in VMEM."""
    bytes_per_row = feat * 4                         # f32
    budget = 24 * 1024 * 1024                        # for 4 input buffers
    max_rows = max(8, budget // (4 * bytes_per_row))
    tile_b = min(max_rows, 1024)                     # diminishing returns past ~1K rows
    # Round the batch itself up to a sublane multiple; never tile past it.
    b_rounded = ((batch + 7) // 8) * 8
    tile_b = min(tile_b, b_rounded)
    return max(8, (tile_b // 8) * 8)                 # multiple of 8 sublanes


def cosine_similarity_loss(predictions: jax.Array, targets: jax.Array) -> jax.Array:
    """Returns mean(1 - cosine_similarity(predictions, targets, dim=1))."""
    assert predictions.shape == targets.shape
    B, D = predictions.shape

    predictions = predictions.astype(jnp.float32)
    targets = targets.astype(jnp.float32)

    tile_b = _choose_tile_b(B, D)
    num_tiles = pl.cdiv(B, tile_b)
    B_pad = num_tiles * tile_b
    if B_pad != B:
        # Zero-padded rows have zero norms -> cos = 0 -> contribute nothing.
        pad = B_pad - B
        predictions = jnp.pad(predictions, ((0, pad), (0, 0)))
        targets = jnp.pad(targets, ((0, pad), (0, 0)))

    cos = pl.pallas_call(
        _cosine_kernel,
        out_shape=jax.ShapeDtypeStruct((B_pad, 1), jnp.float32),
        grid_spec=pltpu.PrefetchScalarGridSpec(
            num_scalar_prefetch=0,
            grid=(num_tiles,),
            in_specs=[
                pl.BlockSpec((tile_b, D), lambda i: (i, 0)),
                pl.BlockSpec((tile_b, D), lambda i: (i, 0)),
            ],
            out_specs=pl.BlockSpec((tile_b, 1), lambda i: (i, 0)),
        ),
        compiler_params=pltpu.CompilerParams(
            dimension_semantics=("parallel",),        # shard grid across TCs (v7x)
            vmem_limit_bytes=40 * 1024 * 1024,        # > v5e 16MiB default, < v7x 64MiB phys
        ),
    )(predictions, targets)

    # mean(1 - cos) over the true batch; padded rows contributed cos = 0.
    return (jnp.float32(B) - jnp.sum(cos)) / jnp.float32(B)


if __name__ == "__main__":
    key = jax.random.PRNGKey(0)
    kp, kt = jax.random.split(key)
    B, D = 16, 128
    predictions = jax.random.normal(kp, (B, D), dtype=jnp.float32)
    targets = jax.random.normal(kt, (B, D), dtype=jnp.float32)

    loss = cosine_similarity_loss(predictions, targets)
    loss = jax.block_until_ready(loss)

    # reference check (pure JAX)
    dot = jnp.sum(predictions * targets, axis=1)
    np_ = jnp.linalg.norm(predictions, axis=1)
    nt_ = jnp.linalg.norm(targets, axis=1)
    cos_ref = jnp.where((np_ > 0) & (nt_ > 0), dot / (np_ * nt_), 0.0)
    ref = jnp.mean(1.0 - cos_ref)
    assert jnp.allclose(loss, ref, atol=1e-5, rtol=1e-5), (loss, ref)

    print("KERNEL_OK")
</pallas_src>

<mosaic_0001>
module attributes {stable_mosaic.version = 11 : i64} {
  func.func @_cosine_kernel(%arg0: i32, %arg1: memref<16x128xf32, #tpu.memory_space<vmem>>, %arg2: memref<16x128xf32, #tpu.memory_space<vmem>>, %arg3: memref<16x1xf32, #tpu.memory_space<vmem>>) attributes {dimension_semantics = [#tpu.dimension_semantics<parallel>], iteration_bounds = array<i64: 1>, scalar_prefetch = 0 : i64, scratch_operands = 0 : i64, tpu.core_type = #tpu.core_type<tc>, window_params = [{transform_indices = @transform_0, window_bounds = array<i64: 16, 128>}, {transform_indices = @transform_1, window_bounds = array<i64: 16, 128>}, {transform_indices = @transform_2, window_bounds = array<i64: 16, 1>}]} {
    %c0 = arith.constant 0 : index
    %c0_0 = arith.constant 0 : index
    %0 = vector.load %arg1[%c0, %c0_0] : memref<16x128xf32, #tpu.memory_space<vmem>>, vector<16x128xf32>
    %c0_1 = arith.constant 0 : index
    %c0_2 = arith.constant 0 : index
    %1 = vector.load %arg2[%c0_1, %c0_2] : memref<16x128xf32, #tpu.memory_space<vmem>>, vector<16x128xf32>
    %2 = arith.mulf %0, %1 : vector<16x128xf32>
    %cst = arith.constant dense<0.000000e+00> : vector<16xf32>
    %3 = vector.multi_reduction <add>, %2, %cst [1] : vector<16x128xf32> to vector<16xf32>
    %4 = vector.shape_cast %3 : vector<16xf32> to vector<16x1xf32>
    %5 = arith.mulf %0, %0 : vector<16x128xf32>
    %cst_3 = arith.constant dense<0.000000e+00> : vector<16xf32>
    %6 = vector.multi_reduction <add>, %5, %cst_3 [1] : vector<16x128xf32> to vector<16xf32>
    %7 = vector.shape_cast %6 : vector<16xf32> to vector<16x1xf32>
    %8 = arith.mulf %1, %1 : vector<16x128xf32>
    %cst_4 = arith.constant dense<0.000000e+00> : vector<16xf32>
    %9 = vector.multi_reduction <add>, %8, %cst_4 [1] : vector<16x128xf32> to vector<16xf32>
    %10 = vector.shape_cast %9 : vector<16xf32> to vector<16x1xf32>
    %cst_5 = arith.constant 0.000000e+00 : f32
    %11 = vector.broadcast %cst_5 : f32 to vector<16x1xf32>
    %12 = arith.cmpf ogt, %7, %11 : vector<16x1xf32>
    %cst_6 = arith.constant 0.000000e+00 : f32
    %13 = vector.broadcast %cst_6 : f32 to vector<16x1xf32>
    %14 = arith.cmpf ogt, %10, %13 : vector<16x1xf32>
    %15 = arith.andi %12, %14 : vector<16x1xi1>
    %cst_7 = arith.constant 1.000000e+00 : f32
    %16 = vector.broadcast %cst_7 : f32 to vector<16x1xf32>
    %17 = arith.select %15, %7, %16 : vector<16x1xi1>, vector<16x1xf32>
    %cst_8 = arith.constant 1.000000e+00 : f32
    %18 = vector.broadcast %cst_8 : f32 to vector<16x1xf32>
    %19 = arith.select %15, %10, %18 : vector<16x1xi1>, vector<16x1xf32>
    %20 = math.rsqrt %17 : vector<16x1xf32>
    %21 = arith.mulf %4, %20 : vector<16x1xf32>
    %22 = math.rsqrt %19 : vector<16x1xf32>
    %23 = arith.mulf %21, %22 : vector<16x1xf32>
    %cst_9 = arith.constant 0.000000e+00 : f32
    %24 = vector.broadcast %cst_9 : f32 to vector<16x1xf32>
    %25 = arith.select %15, %23, %24 : vector<16x1xi1>, vector<16x1xf32>
    %c0_10 = arith.constant 0 : index
    %c0_11 = arith.constant 0 : index
    %26 = vector.load %arg3[%c0_10, %c0_11] : memref<16x1xf32, #tpu.memory_space<vmem>>, vector<16x1xf32>
    tpu.vector_store %arg3[%c0_10, %c0_11], %25 {strides = array<i32>} : memref<16x1xf32, #tpu.memory_space<vmem>>, vector<16x1xf32>,
    return
  }
  func.func @transform_0(%arg0: i32) -> (i32, i32) {
    %c0_i32 = arith.constant 0 : i32
    %c0_i32_0 = arith.constant 0 : i32
    return %arg0, %c0_i32 : i32, i32
  }
  func.func @transform_1(%arg0: i32) -> (i32, i32) {
    %c0_i32 = arith.constant 0 : i32
    %c0_i32_0 = arith.constant 0 : i32
    return %arg0, %c0_i32 : i32, i32
  }
  func.func @transform_2(%arg0: i32) -> (i32, i32) {
    %c0_i32 = arith.constant 0 : i32
    %c0_i32_0 = arith.constant 0 : i32
    return %arg0, %c0_i32 : i32, i32
  }
}

</mosaic_0001>

<llo_original>
// kernel: tpu_custom_call.1
$region0: #{tpu_custom_call.1}
  #allocation0 [shape = 'u32[]', space=smem, size = 0x4, offset = 0x4, fixed_abs, tag = 'smem constant byte address 0x4 - core index']
  #allocation1 [shape = 'u32[144,128]{1,0:T(1,128)}', space=vmem, size = 0x12000, scoped, tag = 'internal scratch']
  %s0 = inlined_call_operand.hbm [shape: f32[16,128], index: 0, kind: input, shape index: {}]
  %s1 = inlined_call_operand.hbm [shape: f32[16,128], index: 1, kind: input, shape index: {}]
  %s2 = inlined_call_operand.vmem [shape: f32[16,1], index: 2, kind: output, shape index: {}]
  %s3 = sld [smem:[#allocation0]]
  $region26: #{tpu_custom_call.1} parent=0
    _
  %s5 = ssub.s32 1, %s3
  %s6 = scalar_select 0, %s5, %s3
  $region1: #{tpu_custom_call.1} parent=0
    #allocation2 [shape = 'u8[8192]{0}', space=vmem, size = 0x2000, scoped, tag = 'input window, operand 0, single buffered']
    #allocation3 [shape = 's32[1]{0}', space=sflag, size = 0x4, scoped, tag = 'scoped memory for tpu_custom_call.1']
    #allocation4 [shape = 'u8[8192]{0}', space=vmem, size = 0x2000, scoped, tag = 'input window, operand 1, single buffered']
    #allocation5 [shape = 's32[1]{0}', space=sflag, size = 0x4, scoped, tag = 'scoped memory for tpu_custom_call.1']
    %7 = vsyncpa [#allocation3], 0
    %8 = vsyncpa [#allocation5], 0
    // Predicated region
    $region2: #{tpu_custom_call.1} parent=1 // pred_check
      _
    $region3: #{tpu_custom_call.1} parent=1 // pred_check_branch
      %10 = sbr.rel (0) target = $region5
    $region4: #{tpu_custom_call.1} parent=1 // pred_region
      %s12 = ssub.s32 256, 256
      %13 = vsyncadd [#allocation3], %s12
      %s14 = sshll.u32 [#allocation2], 4
      %s15 = int_to_ptr.vmem [resolvable:$true] %s14
      %20 = dma.hbm_to_vmem [thread:$0]  %s0, 256, %s15, [#allocation3], 128, 128, 8
    $region5: #{tpu_custom_call.1} parent=1 // pred_fallthru
      _
    // Predicated region
    $region6: #{tpu_custom_call.1} parent=1 // pred_check
      _
    $region7: #{tpu_custom_call.1} parent=1 // pred_check_branch
      %22 = sbr.rel (0) target = $region9
    $region8: #{tpu_custom_call.1} parent=1 // pred_region
      %s24 = ssub.s32 256, 256
      %25 = vsyncadd [#allocation5], %s24
      %s26 = sshll.u32 [#allocation4], 4
      %s27 = int_to_ptr.vmem [resolvable:$true] %s26
      %32 = dma.hbm_to_vmem [thread:$0]  %s1, 256, %s27, [#allocation5], 128, 128, 8
    $region9: #{tpu_custom_call.1} parent=1 // pred_fallthru
      _
    // Predicated region
    $region10: #{tpu_custom_call.1} parent=1 // pred_check
      _
    $region11: #{tpu_custom_call.1} parent=1 // pred_check_branch
      %34 = sbr.rel (0) target = $region13
    $region12: #{tpu_custom_call.1} parent=1 // pred_region
      %35 = dma.done [#allocation3], 256
    $region13: #{tpu_custom_call.1} parent=1 // pred_fallthru
      _
    // Predicated region
    $region14: #{tpu_custom_call.1} parent=1 // pred_check
      _
    $region15: #{tpu_custom_call.1} parent=1 // pred_check_branch
      %37 = sbr.rel (0) target = $region17
    $region16: #{tpu_custom_call.1} parent=1 // pred_region
      %38 = dma.done [#allocation5], 256
    $region17: #{tpu_custom_call.1} parent=1 // pred_fallthru
      _
    %v39 = vld [vmem:[#allocation2] sm:$0xff]
    %v40 = vld [vmem:[#allocation2 + $0x8] sm:$0xff]
    %v41 = vld [vmem:[#allocation4] sm:$0xff]
    %v42 = vld [vmem:[#allocation4 + $0x8] sm:$0xff]
    %v43 = vmul.f32 %v39, %v41
    %v44 = vmul.f32 %v40, %v42
    %45 = vadd.xlane.f32.xlu0 %v43
    %v46 = vpop.xlane.xlu0 %45
    %47 = vadd.xlane.f32.xlu0 %v44
    %v48 = vpop.xlane.xlu0 %47
    %v49 = vmul.f32 %v39, %v39
    %v50 = vmul.f32 %v40, %v40
    %51 = vadd.xlane.f32.xlu0 %v49
    %v52 = vpop.xlane.xlu0 %51
    %53 = vadd.xlane.f32.xlu0 %v50
    %v54 = vpop.xlane.xlu0 %53
    %v55 = vmul.f32 %v41, %v41
    %v56 = vmul.f32 %v42, %v42
    %57 = vadd.xlane.f32.xlu0 %v55
    %v58 = vpop.xlane.xlu0 %57
    %59 = vadd.xlane.f32.xlu0 %v56
    %v60 = vpop.xlane.xlu0 %59
    %vm61 = vcmp.gt.f32.partialorder %v52, 0.0
    %vm62 = vcmp.gt.f32.partialorder %v54, 0.0
    %vm63 = vcmp.gt.f32.partialorder %v58, 0.0
    %vm64 = vcmp.gt.f32.partialorder %v60, 0.0
    %vm65 = vmand %vm61, %vm63
    %vm66 = vmand %vm62, %vm64
    %v67 = vsel %vm65, %v52, 1.0
    %v68 = vsel %vm66, %v54, 1.0
    %v69 = vsel %vm65, %v58, 1.0
    %v70 = vsel %vm66, %v60, 1.0
    %v71 = vrsqrt.pop %v67
    %v72 = vrsqrt.pop %v68
    %v73 = vmul.f32 %v46, %v71
    %v74 = vmul.f32 %v48, %v72
    %v75 = vrsqrt.pop %v69
    %v76 = vrsqrt.pop %v70
    %v77 = vmul.f32 %v73, %v75
    %v78 = vmul.f32 %v74, %v76
    %v79 = vsel %vm65, %v77, 0.0
    %v80 = vsel %vm66, %v78, 0.0
    %vm81 = vcmask 7168
    %82 = vst.msk [vmem:[%s2] sm:$0xff] %vm81, %v79
    %83 = vst.msk [vmem:[%s2 + $0x8] sm:$0xff] %vm81, %v80
    // Predicated region
    $region18: #{tpu_custom_call.1} parent=1 // pred_check
      _
    $region19: #{tpu_custom_call.1} parent=1 // pred_check_branch
      %85 = sbr.rel (0) target = $region21
    $region20: #{tpu_custom_call.1} parent=1 // pred_region
      _
    $region21: #{tpu_custom_call.1} parent=1 // pred_fallthru
      _
    // Predicated region
    $region22: #{tpu_custom_call.1} parent=1 // pred_check
      _
    $region23: #{tpu_custom_call.1} parent=1 // pred_check_branch
      %87 = sbr.rel (0) target = $region25
    $region24: #{tpu_custom_call.1} parent=1 // pred_region
      _
    $region25: #{tpu_custom_call.1} parent=1 // pred_fallthru
      _
    %88 = vsyncpa [#allocation3], 1
    %89 = vsyncpa [#allocation5], 1

</llo_original>
